<compile_context>
chip_gen: v7x
topology: tpu7x:2x2x1
jax: 0.10.0
libtpu: 0.0.40
codegen_flags: <defaults>
</compile_context>

<pallas_src>
import functools

import jax
import jax.numpy as jnp
from jax import lax
from jax.experimental import pallas as pl
from jax.experimental.pallas import tpu as pltpu

LN_EPS = 1e-5
_VMEM_LIMIT = 48 * 1024 * 1024          # <= physical VMEM on v5e/v6e/v7x
_FUSED_BUDGET = 24 * 1024 * 1024        # conservative per-step working-set cap


# ---------------------------------------------------------------------------
# Shared channel-MLP helper: ctx (M, C) -> (add (M, C), sigmoid-mul (M, C)).
# packc: (2P+3, C) = [w1_add; w1_mul; wmask; b2_add; b2_mul]
# packp: (3, 2P)   = [b1(add|mul); gamma(add|mul); beta(add|mul)]
# w2   : (2, C, P)
# ---------------------------------------------------------------------------
def _channel_mlp(ctx, packc, packp, w2, P):
    P2 = 2 * P
    w1f = packc[0:P2, :]                  # (2P, C)  both branches, one matmul
    b1f = packp[0:1, :]                   # (1, 2P)
    gf = packp[1:2, :]
    btf = packp[2:3, :]
    # single fused MXU contraction for both branches' first 1x1 conv
    h = lax.dot_general(ctx, w1f, (((1,), (1,)), ((), ())),
                        preferred_element_type=jnp.float32) + b1f      # (M, 2P)
    outs = []
    for k in range(2):                    # 0 = channel_add, 1 = channel_mul
        s0, s1 = k * P, (k + 1) * P
        hk = h[:, s0:s1]                                               # (M, P)
        mu = jnp.mean(hk, axis=-1, keepdims=True)
        var = jnp.mean((hk - mu) ** 2, axis=-1, keepdims=True)         # biased (PyTorch LN)
        hk = (hk - mu) * lax.rsqrt(var + LN_EPS) * gf[:, s0:s1] + btf[:, s0:s1]
        hk = jnp.maximum(hk, 0.0)
        res = lax.dot_general(hk, w2[k], (((1,), (1,)), ((), ())),
                              preferred_element_type=jnp.float32)      # (M, C)
        outs.append(res + packc[P2 + 1 + k:P2 + 2 + k, :])             # + b2[k]
    return outs[0], jax.nn.sigmoid(outs[1])


# ---------------------------------------------------------------------------
# Path A: fully fused single-pass kernel (small / moderate C*HW).
# ---------------------------------------------------------------------------
def gc_fused_kernel(x_ref, packc_ref, packp_ref, w2_ref, o_ref, *, P, bblk):
    P2 = 2 * P
    x = x_ref[...].astype(jnp.float32)                   # (bblk, C, HW), f32 math
    packc = packc_ref[...]
    packp = packp_ref[...]
    w2 = w2_ref[...]
    wmask = packc[P2:P2 + 1, :]                          # (1, C)

    # Attention pooling, unrolled over the bblk batch rows.  Each row is an
    # independent dependency chain, so the small M=1 MXU GEMVs pipeline across
    # the unroll instead of serializing one long chain per grid step.
    ctx_rows = []
    for bi in range(bblk):
        xb = x[bi]                                                      # (C, HW)
        logits = jnp.dot(wmask, xb, preferred_element_type=jnp.float32)  # (1, HW)
        m = jnp.max(logits, axis=-1, keepdims=True)
        e = jnp.exp(logits - m)                                          # (1, HW)
        # contract with unnormalized weights, then O(C) rescale (no O(HW) divide)
        ctx_b = lax.dot_general(e, xb, (((1,), (1,)), ((), ())),
                                preferred_element_type=jnp.float32)      # (1, C)
        ctx_rows.append(ctx_b * (1.0 / jnp.sum(e, axis=-1, keepdims=True)))
    ctx = ctx_rows[0] if bblk == 1 else jnp.concatenate(ctx_rows, axis=0)  # (bblk, C)

    add_t, mul_t = _channel_mlp(ctx, packc, packp, w2, P)                # (bblk, C)

    # fused epilogue, cast once on the final store (bf16 I/O friendly)
    o_ref[...] = (x * mul_t[:, :, None] + add_t[:, :, None]).astype(o_ref.dtype)


# ---------------------------------------------------------------------------
# Path B, kernel 1: spatially tiled pooling (online softmax) + channel MLPs.
# Emits add/mul vectors of shape (B, 1, C).
# ---------------------------------------------------------------------------
def gc_pool_kernel(x_ref, packc_ref, packp_ref, w2_ref, add_ref, mul_ref,
                   m_sc, s_sc, ctx_sc, *, P):
    P2 = 2 * P
    t = pl.program_id(1)
    x = x_ref[0].astype(jnp.float32)                     # (C, T)
    packc = packc_ref[...]
    wmask = packc[P2:P2 + 1, :]                          # (1, C)

    @pl.when(t == 0)
    def _():
        m_sc[...] = jnp.full((1, 1), -jnp.inf, jnp.float32)
        s_sc[...] = jnp.zeros((1, 1), jnp.float32)
        ctx_sc[...] = jnp.zeros(ctx_sc.shape, jnp.float32)

    logits = jnp.dot(wmask, x, preferred_element_type=jnp.float32)     # (1, T)
    m_prev = m_sc[...]
    m_new = jnp.maximum(m_prev, jnp.max(logits, axis=-1, keepdims=True))
    alpha = jnp.exp(m_prev - m_new)
    e = jnp.exp(logits - m_new)                                        # (1, T)
    s_sc[...] = alpha * s_sc[...] + jnp.sum(e, axis=-1, keepdims=True)
    ctx_sc[...] = alpha * ctx_sc[...] + lax.dot_general(
        e, x, (((1,), (1,)), ((), ())), preferred_element_type=jnp.float32)  # (1, C)
    m_sc[...] = m_new

    @pl.when(t == pl.num_programs(1) - 1)
    def _():
        ctx = ctx_sc[...] * (1.0 / s_sc[...])                          # (1, C)
        add_t, mul_t = _channel_mlp(ctx, packc, packp_ref[...], w2_ref[...], P)
        add_ref[0] = add_t
        mul_ref[0] = mul_t


# ---------------------------------------------------------------------------
# Path B, kernel 2: tiled, fully parallel epilogue  out = x * mul + add.
# ---------------------------------------------------------------------------
def gc_epilogue_kernel(x_ref, add_ref, mul_ref, o_ref):
    x = x_ref[...].astype(jnp.float32)                   # (1, C, T)
    add_t = add_ref[0][:, :, None]                       # (1, C, 1)
    mul_t = mul_ref[0][:, :, None]
    o_ref[...] = (x * mul_t + add_t).astype(o_ref.dtype)


# ---------------------------------------------------------------------------
# Wrapper (PyTorch-compatible forward).  x_nchw: (B, C, H, W) -> (B, C, H, W).
# ---------------------------------------------------------------------------
def gc_block(x_nchw, params, *, force_tiled=False, tile_hint=None):
    B, C, H, W = x_nchw.shape
    HW = H * W
    P = params["w1"].shape[1]
    P2 = 2 * P
    dtype = x_nchw.dtype
    itemsize = jnp.dtype(dtype).itemsize

    # Keep the model's native dtype for x / out (no extra HBM pass).
    x = x_nchw.reshape(B, C, HW)

    # Pack the tiny parameter tensors into 3 refs (in a real model, do once at init).
    pack_c = jnp.concatenate(
        [params["w1"].reshape(P2, C),          # rows 0..2P-1 : conv1 of [add, mul]
         params["wmask"].reshape(1, C),        # row 2P       : conv_mask weight
         params["b2"].reshape(2, C)],          # rows 2P+1..  : conv2 biases
        axis=0).astype(jnp.float32)                                    # (2P+3, C)
    pack_p = jnp.stack(
        [params["b1"].reshape(P2), params["g"].reshape(P2),
         params["beta"].reshape(P2)], axis=0).astype(jnp.float32)      # (3, 2P)
    w2 = params["w2"].astype(jnp.float32)                              # (2, C, P)

    param_args = (pack_c, pack_p, w2)

    # Estimated per-step VMEM for the fused path: double-buffered in/out blocks
    # in the native dtype plus a handful of f32-sized temporaries.
    def fused_vmem_bytes(bblk):
        return bblk * C * HW * (4 * itemsize + 6 * 4)

    use_fused = (not force_tiled) and fused_vmem_bytes(1) <= _FUSED_BUDGET

    if use_fused:
        bblk = 1
        for cand in range(min(B, 8), 0, -1):      # amortize per-step overhead
            if B % cand == 0 and fused_vmem_bytes(cand) <= _FUSED_BUDGET:
                bblk = cand
                break
        out = pl.pallas_call(
            functools.partial(gc_fused_kernel, P=P, bblk=bblk),
            out_shape=jax.ShapeDtypeStruct((B, C, HW), dtype),
            grid_spec=pltpu.PrefetchScalarGridSpec(
                num_scalar_prefetch=0,
                grid=(B // bblk,),
                in_specs=[
                    pl.BlockSpec((bblk, C, HW), lambda b: (b, 0, 0)),
                    pl.BlockSpec((P2 + 3, C), lambda b: (0, 0)),
                    pl.BlockSpec((3, P2), lambda b: (0, 0)),
                    pl.BlockSpec((2, C, P), lambda b: (0, 0, 0)),
                ],
                out_specs=pl.BlockSpec((bblk, C, HW), lambda b: (b, 0, 0)),
            ),
            compiler_params=pltpu.CompilerParams(
                dimension_semantics=("parallel",),
                vmem_limit_bytes=_VMEM_LIMIT),
        )(x, *param_args)
        return out.reshape(B, C, H, W)

    # ---- tiled two-pass path (large C*HW; v7x 64 MiB VMEM safe) -------------
    if tile_hint is not None:
        assert HW % tile_hint == 0
        tile = tile_hint
    else:
        tile = None
        for cand in (2048, 1024, 512, 256, 128):
            if HW % cand == 0 and cand * C * (4 * itemsize + 12) <= _FUSED_BUDGET:
                tile = cand
                break
        if tile is None:
            # TODO(synk): pad HW to a multiple of 128 (with a masked softmax) so
            # non-128-multiple spatial sizes also get lane-dense tiles.
            tile = 128 if HW % 128 == 0 else HW
    n_tiles = HW // tile

    add_t, mul_t = pl.pallas_call(
        functools.partial(gc_pool_kernel, P=P),
        out_shape=(jax.ShapeDtypeStruct((B, 1, C), jnp.float32),
                   jax.ShapeDtypeStruct((B, 1, C), jnp.float32)),
        grid_spec=pltpu.PrefetchScalarGridSpec(
            num_scalar_prefetch=0,
            grid=(B, n_tiles),                     # reduction (HW tiles) last
            in_specs=[
                pl.BlockSpec((1, C, tile), lambda b, t: (b, 0, t)),
                pl.BlockSpec((P2 + 3, C), lambda b, t: (0, 0)),
                pl.BlockSpec((3, P2), lambda b, t: (0, 0)),
                pl.BlockSpec((2, C, P), lambda b, t: (0, 0, 0)),
            ],
            out_specs=(pl.BlockSpec((1, 1, C), lambda b, t: (b, 0, 0)),
                       pl.BlockSpec((1, 1, C), lambda b, t: (b, 0, 0))),
            scratch_shapes=[pltpu.VMEM((1, 1), jnp.float32),   # running max
                            pltpu.VMEM((1, 1), jnp.float32),   # running sum
                            pltpu.VMEM((1, C), jnp.float32)],  # context acc
        ),
        compiler_params=pltpu.CompilerParams(
            dimension_semantics=("parallel", "arbitrary"),
            vmem_limit_bytes=_VMEM_LIMIT),
    )(x, *param_args)

    out = pl.pallas_call(
        gc_epilogue_kernel,
        out_shape=jax.ShapeDtypeStruct((B, C, HW), dtype),
        grid_spec=pltpu.PrefetchScalarGridSpec(
            num_scalar_prefetch=0,
            grid=(B, n_tiles),
            in_specs=[
                pl.BlockSpec((1, C, tile), lambda b, t: (b, 0, t)),
                pl.BlockSpec((1, 1, C), lambda b, t: (b, 0, 0)),
                pl.BlockSpec((1, 1, C), lambda b, t: (b, 0, 0)),
            ],
            out_specs=pl.BlockSpec((1, C, tile), lambda b, t: (b, 0, t)),
        ),
        compiler_params=pltpu.CompilerParams(
            dimension_semantics=("parallel", "parallel"),   # shard across v7x TCs
            vmem_limit_bytes=_VMEM_LIMIT),
    )(x, add_t, mul_t)
    return out.reshape(B, C, H, W)


# ---------------------------------------------------------------------------
# Plain-JAX mirror of GCBlock.forward (pool='att', both fusions) for checking.
# ---------------------------------------------------------------------------
def reference(x, wmask, bmask, w1, b1, g, beta, w2, b2):
    B, C, H, W = x.shape
    HW = H * W
    hp = lax.Precision.HIGHEST
    inp = x.reshape(B, C, HW)
    logits = jnp.einsum("bcs,c->bs", inp, wmask[0], precision=hp) + bmask
    probs = jax.nn.softmax(logits, axis=-1)
    ctx = jnp.einsum("bcs,bs->bc", inp, probs, precision=hp)          # (B, C)

    def transform(k):
        h = jnp.einsum("bc,pc->bp", ctx, w1[k], precision=hp) + b1[k]
        mu = jnp.mean(h, axis=-1, keepdims=True)
        var = jnp.mean((h - mu) ** 2, axis=-1, keepdims=True)
        h = (h - mu) * lax.rsqrt(var + LN_EPS) * g[k] + beta[k]
        h = jnp.maximum(h, 0.0)
        return jnp.einsum("bp,cp->bc", h, w2[k], precision=hp) + b2[k]

    add_term = transform(0)
    mul_term = jax.nn.sigmoid(transform(1))
    return x * mul_term[:, :, None, None] + add_term[:, :, None, None]


if __name__ == "__main__":
    # GCBlock(inplanes=32, planes=8, pool='att', fusions=['channel_add','channel_mul'])
    B, C, P, H, W = 2, 32, 8, 16, 16

    key = jax.random.PRNGKey(0)
    ks = jax.random.split(key, 9)
    x = jax.random.normal(ks[0], (B, C, H, W), dtype=jnp.float32)
    wmask = 0.2 * jax.random.normal(ks[1], (1, C), dtype=jnp.float32)
    bmask = 0.1 * jax.random.normal(ks[2], (1,), dtype=jnp.float32)   # cancels in softmax
    w1 = 0.2 * jax.random.normal(ks[3], (2, P, C), dtype=jnp.float32)  # 0=add, 1=mul
    b1 = 0.1 * jax.random.normal(ks[4], (2, P), dtype=jnp.float32)
    g = 1.0 + 0.1 * jax.random.normal(ks[5], (2, P), dtype=jnp.float32)
    beta = 0.1 * jax.random.normal(ks[6], (2, P), dtype=jnp.float32)
    w2 = 0.2 * jax.random.normal(ks[7], (2, C, P), dtype=jnp.float32)
    b2 = 0.1 * jax.random.normal(ks[8], (2, C), dtype=jnp.float32)
    params = dict(wmask=wmask, w1=w1, b1=b1, g=g, beta=beta, w2=w2, b2=b2)

    ref = jax.block_until_ready(reference(x, wmask, bmask, w1, b1, g, beta, w2, b2))

    # 1) fused single-pass path (f32 I/O)
    out = jax.block_until_ready(gc_block(x, params))
    assert out.shape == (B, C, H, W) and out.dtype == x.dtype
    err = float(jnp.max(jnp.abs(out - ref)))
    assert jnp.allclose(out, ref, atol=1e-4, rtol=1e-4), err

    # 2) tiled two-pass path (exercises the large-shape / v7x-VMEM-safe structure)
    out_t = jax.block_until_ready(gc_block(x, params, force_tiled=True, tile_hint=128))
    err_t = float(jnp.max(jnp.abs(out_t - ref)))
    assert jnp.allclose(out_t, ref, atol=1e-4, rtol=1e-4), err_t

    # 3) bf16 I/O path (native-dtype passthrough; internal math stays f32)
    x_bf16 = x.astype(jnp.bfloat16)
    ref_bf16 = reference(x_bf16.astype(jnp.float32), wmask, bmask, w1, b1, g, beta, w2, b2)
    out_bf16 = jax.block_until_ready(gc_block(x_bf16, params))
    assert out_bf16.dtype == jnp.bfloat16
    err_b = float(jnp.max(jnp.abs(out_bf16.astype(jnp.float32) - ref_bf16)))
    assert err_b < 3e-2, err_b

    print("KERNEL_OK")
</pallas_src>

<mosaic_0001>
module attributes {stable_mosaic.version = 11 : i64} {
  func.func @gc_fused_kernel(%arg0: i32, %arg1: memref<2x32x256xf32, #tpu.memory_space<vmem>>, %arg2: memref<19x32xf32, #tpu.memory_space<vmem>>, %arg3: memref<3x16xf32, #tpu.memory_space<vmem>>, %arg4: memref<2x32x8xf32, #tpu.memory_space<vmem>>, %arg5: memref<2x32x256xf32, #tpu.memory_space<vmem>>) attributes {dimension_semantics = [#tpu.dimension_semantics<parallel>], iteration_bounds = array<i64: 1>, scalar_prefetch = 0 : i64, scratch_operands = 0 : i64, tpu.core_type = #tpu.core_type<tc>, window_params = [{transform_indices = @transform_0, window_bounds = array<i64: 2, 32, 256>}, {pipeline_mode = #tpu.pipeline_mode<synchronous>, transform_indices = @transform_1, window_bounds = array<i64: 19, 32>}, {pipeline_mode = #tpu.pipeline_mode<synchronous>, transform_indices = @transform_2, window_bounds = array<i64: 3, 16>}, {pipeline_mode = #tpu.pipeline_mode<synchronous>, transform_indices = @transform_3, window_bounds = array<i64: 2, 32, 8>}, {transform_indices = @transform_4, window_bounds = array<i64: 2, 32, 256>}]} {
    %c0 = arith.constant 0 : index
    %c0_0 = arith.constant 0 : index
    %c0_1 = arith.constant 0 : index
    %0 = vector.load %arg1[%c0, %c0_0, %c0_1] : memref<2x32x256xf32, #tpu.memory_space<vmem>>, vector<2x32x256xf32>
    %c0_2 = arith.constant 0 : index
    %c0_3 = arith.constant 0 : index
    %1 = vector.load %arg2[%c0_2, %c0_3] : memref<19x32xf32, #tpu.memory_space<vmem>>, vector<19x32xf32>
    %c0_4 = arith.constant 0 : index
    %c0_5 = arith.constant 0 : index
    %2 = vector.load %arg3[%c0_4, %c0_5] : memref<3x16xf32, #tpu.memory_space<vmem>>, vector<3x16xf32>
    %c0_6 = arith.constant 0 : index
    %c0_7 = arith.constant 0 : index
    %c0_8 = arith.constant 0 : index
    %3 = vector.load %arg4[%c0_6, %c0_7, %c0_8] : memref<2x32x8xf32, #tpu.memory_space<vmem>>, vector<2x32x8xf32>
    %4 = vector.extract_strided_slice %1 {offsets = [16, 0], sizes = [1, 32], strides = [1, 1]} : vector<19x32xf32> to vector<1x32xf32>
    %5 = vector.extract_strided_slice %0 {offsets = [0, 0, 0], sizes = [1, 32, 256], strides = [1, 1, 1]} : vector<2x32x256xf32> to vector<1x32x256xf32>
    %6 = vector.shape_cast %5 : vector<1x32x256xf32> to vector<32x256xf32>
    %cst = arith.constant dense<0.000000e+00> : vector<1x256xf32>
    %7 = tpu.matmul %4, %6, %cst {dimension_numbers = #tpu.dot_dimension_numbers<[1], [0], [0], [1], [0, 0, 1, 1], [], []>} : vector<1x32xf32>, vector<32x256xf32>, vector<1x256xf32> -> vector<1x256xf32>
    %cst_9 = arith.constant dense<0xFF800000> : vector<1xf32>
    %8 = vector.multi_reduction <maximumf>, %7, %cst_9 [1] : vector<1x256xf32> to vector<1xf32>
    %9 = vector.shape_cast %8 : vector<1xf32> to vector<1x1xf32>
    %10 = vector.broadcast %9 : vector<1x1xf32> to vector<1x256xf32>
    %11 = arith.subf %7, %10 : vector<1x256xf32>
    %12 = math.exp %11 : vector<1x256xf32>
    %cst_10 = arith.constant dense<0.000000e+00> : vector<1x32xf32>
    %13 = tpu.matmul %12, %6, %cst_10 {dimension_numbers = #tpu.dot_dimension_numbers<[1], [1], [0], [0], [0, 0, 1, 0], [], []>} : vector<1x256xf32>, vector<32x256xf32>, vector<1x32xf32> -> vector<1x32xf32>
    %cst_11 = arith.constant dense<0.000000e+00> : vector<1xf32>
    %14 = vector.multi_reduction <add>, %12, %cst_11 [1] : vector<1x256xf32> to vector<1xf32>
    %15 = vector.shape_cast %14 : vector<1xf32> to vector<1x1xf32>
    %cst_12 = arith.constant 1.000000e+00 : f32
    %16 = vector.broadcast %cst_12 : f32 to vector<1x1xf32>
    %17 = arith.divf %16, %15 : vector<1x1xf32>
    %18 = vector.broadcast %17 : vector<1x1xf32> to vector<1x32xf32>
    %19 = arith.mulf %13, %18 : vector<1x32xf32>
    %20 = vector.extract_strided_slice %0 {offsets = [1, 0, 0], sizes = [1, 32, 256], strides = [1, 1, 1]} : vector<2x32x256xf32> to vector<1x32x256xf32>
    %21 = vector.shape_cast %20 : vector<1x32x256xf32> to vector<32x256xf32>
    %cst_13 = arith.constant dense<0.000000e+00> : vector<1x256xf32>
    %22 = tpu.matmul %4, %21, %cst_13 {dimension_numbers = #tpu.dot_dimension_numbers<[1], [0], [0], [1], [0, 0, 1, 1], [], []>} : vector<1x32xf32>, vector<32x256xf32>, vector<1x256xf32> -> vector<1x256xf32>
    %cst_14 = arith.constant dense<0xFF800000> : vector<1xf32>
    %23 = vector.multi_reduction <maximumf>, %22, %cst_14 [1] : vector<1x256xf32> to vector<1xf32>
    %24 = vector.shape_cast %23 : vector<1xf32> to vector<1x1xf32>
    %25 = vector.broadcast %24 : vector<1x1xf32> to vector<1x256xf32>
    %26 = arith.subf %22, %25 : vector<1x256xf32>
    %27 = math.exp %26 : vector<1x256xf32>
    %cst_15 = arith.constant dense<0.000000e+00> : vector<1x32xf32>
    %28 = tpu.matmul %27, %21, %cst_15 {dimension_numbers = #tpu.dot_dimension_numbers<[1], [1], [0], [0], [0, 0, 1, 0], [], []>} : vector<1x256xf32>, vector<32x256xf32>, vector<1x32xf32> -> vector<1x32xf32>
    %cst_16 = arith.constant dense<0.000000e+00> : vector<1xf32>
    %29 = vector.multi_reduction <add>, %27, %cst_16 [1] : vector<1x256xf32> to vector<1xf32>
    %30 = vector.shape_cast %29 : vector<1xf32> to vector<1x1xf32>
    %cst_17 = arith.constant 1.000000e+00 : f32
    %31 = vector.broadcast %cst_17 : f32 to vector<1x1xf32>
    %32 = arith.divf %31, %30 : vector<1x1xf32>
    %33 = vector.broadcast %32 : vector<1x1xf32> to vector<1x32xf32>
    %34 = arith.mulf %28, %33 : vector<1x32xf32>
    %35 = tpu.concatenate %19, %34 in 0 : vector<1x32xf32>, vector<1x32xf32> -> vector<2x32xf32>
    %36 = vector.extract_strided_slice %1 {offsets = [0, 0], sizes = [16, 32], strides = [1, 1]} : vector<19x32xf32> to vector<16x32xf32>
    %37 = vector.extract_strided_slice %2 {offsets = [0, 0], sizes = [1, 16], strides = [1, 1]} : vector<3x16xf32> to vector<1x16xf32>
    %38 = vector.extract_strided_slice %2 {offsets = [1, 0], sizes = [1, 16], strides = [1, 1]} : vector<3x16xf32> to vector<1x16xf32>
    %39 = vector.extract_strided_slice %2 {offsets = [2, 0], sizes = [1, 16], strides = [1, 1]} : vector<3x16xf32> to vector<1x16xf32>
    %cst_18 = arith.constant dense<0.000000e+00> : vector<2x16xf32>
    %40 = tpu.matmul %35, %36, %cst_18 {dimension_numbers = #tpu.dot_dimension_numbers<[1], [1], [0], [0], [0, 0, 1, 0], [], []>} : vector<2x32xf32>, vector<16x32xf32>, vector<2x16xf32> -> vector<2x16xf32>
    %41 = vector.broadcast %37 : vector<1x16xf32> to vector<2x16xf32>
    %42 = arith.addf %40, %41 : vector<2x16xf32>
    %43 = vector.extract_strided_slice %42 {offsets = [0, 0], sizes = [2, 8], strides = [1, 1]} : vector<2x16xf32> to vector<2x8xf32>
    %cst_19 = arith.constant dense<0.000000e+00> : vector<2xf32>
    %44 = vector.multi_reduction <add>, %43, %cst_19 [1] : vector<2x8xf32> to vector<2xf32>
    %45 = vector.shape_cast %44 : vector<2xf32> to vector<2x1xf32>
    %cst_20 = arith.constant 8.000000e+00 : f32
    %46 = vector.broadcast %cst_20 : f32 to vector<2x1xf32>
    %47 = arith.divf %45, %46 : vector<2x1xf32>
    %48 = vector.broadcast %47 : vector<2x1xf32> to vector<2x8xf32>
    %49 = arith.subf %43, %48 : vector<2x8xf32>
    %50 = arith.mulf %49, %49 : vector<2x8xf32>
    %cst_21 = arith.constant dense<0.000000e+00> : vector<2xf32>
    %51 = vector.multi_reduction <add>, %50, %cst_21 [1] : vector<2x8xf32> to vector<2xf32>
    %52 = vector.shape_cast %51 : vector<2xf32> to vector<2x1xf32>
    %cst_22 = arith.constant 8.000000e+00 : f32
    %53 = vector.broadcast %cst_22 : f32 to vector<2x1xf32>
    %54 = arith.divf %52, %53 : vector<2x1xf32>
    %55 = vector.broadcast %47 : vector<2x1xf32> to vector<2x8xf32>
    %56 = arith.subf %43, %55 : vector<2x8xf32>
    %cst_23 = arith.constant 9.99999974E-6 : f32
    %57 = vector.broadcast %cst_23 : f32 to vector<2x1xf32>
    %58 = arith.addf %54, %57 : vector<2x1xf32>
    %59 = math.rsqrt %58 : vector<2x1xf32>
    %60 = vector.broadcast %59 : vector<2x1xf32> to vector<2x8xf32>
    %61 = arith.mulf %56, %60 : vector<2x8xf32>
    %62 = vector.extract_strided_slice %38 {offsets = [0, 0], sizes = [1, 8], strides = [1, 1]} : vector<1x16xf32> to vector<1x8xf32>
    %63 = vector.broadcast %62 : vector<1x8xf32> to vector<2x8xf32>
    %64 = arith.mulf %61, %63 : vector<2x8xf32>
    %65 = vector.extract_strided_slice %39 {offsets = [0, 0], sizes = [1, 8], strides = [1, 1]} : vector<1x16xf32> to vector<1x8xf32>
    %66 = vector.broadcast %65 : vector<1x8xf32> to vector<2x8xf32>
    %67 = arith.addf %64, %66 : vector<2x8xf32>
    %cst_24 = arith.constant 0.000000e+00 : f32
    %68 = vector.broadcast %cst_24 : f32 to vector<2x8xf32>
    %69 = arith.maximumf %67, %68 : vector<2x8xf32>
    %70 = vector.extract_strided_slice %3 {offsets = [0, 0, 0], sizes = [1, 32, 8], strides = [1, 1, 1]} : vector<2x32x8xf32> to vector<1x32x8xf32>
    %71 = vector.shape_cast %70 : vector<1x32x8xf32> to vector<32x8xf32>
    %cst_25 = arith.constant dense<0.000000e+00> : vector<2x32xf32>
    %72 = tpu.matmul %69, %71, %cst_25 {dimension_numbers = #tpu.dot_dimension_numbers<[1], [1], [0], [0], [0, 0, 1, 0], [], []>} : vector<2x8xf32>, vector<32x8xf32>, vector<2x32xf32> -> vector<2x32xf32>
    %73 = vector.extract_strided_slice %1 {offsets = [17, 0], sizes = [1, 32], strides = [1, 1]} : vector<19x32xf32> to vector<1x32xf32>
    %74 = vector.broadcast %73 : vector<1x32xf32> to vector<2x32xf32>
    %75 = arith.addf %72, %74 : vector<2x32xf32>
    %76 = vector.extract_strided_slice %42 {offsets = [0, 8], sizes = [2, 8], strides = [1, 1]} : vector<2x16xf32> to vector<2x8xf32>
    %cst_26 = arith.constant dense<0.000000e+00> : vector<2xf32>
    %77 = vector.multi_reduction <add>, %76, %cst_26 [1] : vector<2x8xf32> to vector<2xf32>
    %78 = vector.shape_cast %77 : vector<2xf32> to vector<2x1xf32>
    %cst_27 = arith.constant 8.000000e+00 : f32
    %79 = vector.broadcast %cst_27 : f32 to vector<2x1xf32>
    %80 = arith.divf %78, %79 : vector<2x1xf32>
    %81 = vector.broadcast %80 : vector<2x1xf32> to vector<2x8xf32>
    %82 = arith.subf %76, %81 : vector<2x8xf32>
    %83 = arith.mulf %82, %82 : vector<2x8xf32>
    %cst_28 = arith.constant dense<0.000000e+00> : vector<2xf32>
    %84 = vector.multi_reduction <add>, %83, %cst_28 [1] : vector<2x8xf32> to vector<2xf32>
    %85 = vector.shape_cast %84 : vector<2xf32> to vector<2x1xf32>
    %cst_29 = arith.constant 8.000000e+00 : f32
    %86 = vector.broadcast %cst_29 : f32 to vector<2x1xf32>
    %87 = arith.divf %85, %86 : vector<2x1xf32>
    %88 = vector.broadcast %80 : vector<2x1xf32> to vector<2x8xf32>
    %89 = arith.subf %76, %88 : vector<2x8xf32>
    %cst_30 = arith.constant 9.99999974E-6 : f32
    %90 = vector.broadcast %cst_30 : f32 to vector<2x1xf32>
    %91 = arith.addf %87, %90 : vector<2x1xf32>
    %92 = math.rsqrt %91 : vector<2x1xf32>
    %93 = vector.broadcast %92 : vector<2x1xf32> to vector<2x8xf32>
    %94 = arith.mulf %89, %93 : vector<2x8xf32>
    %95 = vector.extract_strided_slice %38 {offsets = [0, 8], sizes = [1, 8], strides = [1, 1]} : vector<1x16xf32> to vector<1x8xf32>
    %96 = vector.broadcast %95 : vector<1x8xf32> to vector<2x8xf32>
    %97 = arith.mulf %94, %96 : vector<2x8xf32>
    %98 = vector.extract_strided_slice %39 {offsets = [0, 8], sizes = [1, 8], strides = [1, 1]} : vector<1x16xf32> to vector<1x8xf32>
    %99 = vector.broadcast %98 : vector<1x8xf32> to vector<2x8xf32>
    %100 = arith.addf %97, %99 : vector<2x8xf32>
    %cst_31 = arith.constant 0.000000e+00 : f32
    %101 = vector.broadcast %cst_31 : f32 to vector<2x8xf32>
    %102 = arith.maximumf %100, %101 : vector<2x8xf32>
    %103 = vector.extract_strided_slice %3 {offsets = [1, 0, 0], sizes = [1, 32, 8], strides = [1, 1, 1]} : vector<2x32x8xf32> to vector<1x32x8xf32>
    %104 = vector.shape_cast %103 : vector<1x32x8xf32> to vector<32x8xf32>
    %cst_32 = arith.constant dense<0.000000e+00> : vector<2x32xf32>
    %105 = tpu.matmul %102, %104, %cst_32 {dimension_numbers = #tpu.dot_dimension_numbers<[1], [1], [0], [0], [0, 0, 1, 0], [], []>} : vector<2x8xf32>, vector<32x8xf32>, vector<2x32xf32> -> vector<2x32xf32>
    %106 = vector.extract_strided_slice %1 {offsets = [18, 0], sizes = [1, 32], strides = [1, 1]} : vector<19x32xf32> to vector<1x32xf32>
    %107 = vector.broadcast %106 : vector<1x32xf32> to vector<2x32xf32>
    %108 = arith.addf %105, %107 : vector<2x32xf32>
    %109 = arith.negf %108 : vector<2x32xf32>
    %110 = math.exp %109 : vector<2x32xf32>
    %cst_33 = arith.constant 1.000000e+00 : f32
    %111 = vector.broadcast %cst_33 : f32 to vector<2x32xf32>
    %112 = arith.addf %111, %110 : vector<2x32xf32>
    %113 = arith.divf %111, %112 : vector<2x32xf32>
    %114 = vector.shape_cast %113 : vector<2x32xf32> to vector<2x32x1xf32>
    %115 = vector.broadcast %114 : vector<2x32x1xf32> to vector<2x32x256xf32>
    %116 = arith.mulf %0, %115 : vector<2x32x256xf32>
    %117 = vector.shape_cast %75 : vector<2x32xf32> to vector<2x32x1xf32>
    %118 = vector.broadcast %117 : vector<2x32x1xf32> to vector<2x32x256xf32>
    %119 = arith.addf %116, %118 : vector<2x32x256xf32>
    %c0_34 = arith.constant 0 : index
    %c0_35 = arith.constant 0 : index
    %c0_36 = arith.constant 0 : index
    %120 = vector.load %arg5[%c0_34, %c0_35, %c0_36] : memref<2x32x256xf32, #tpu.memory_space<vmem>>, vector<2x32x256xf32>
    tpu.vector_store %arg5[%c0_34, %c0_35, %c0_36], %119 {strides = array<i32>} : memref<2x32x256xf32, #tpu.memory_space<vmem>>, vector<2x32x256xf32>,
    return
  }
  func.func @transform_0(%arg0: i32) -> (i32, i32, i32) {
    %c0_i32 = arith.constant 0 : i32
    %c0_i32_0 = arith.constant 0 : i32
    %c0_i32_1 = arith.constant 0 : i32
    return %arg0, %c0_i32, %c0_i32_0 : i32, i32, i32
  }
  func.func @transform_1(%arg0: i32) -> (i32, i32) {
    %c0_i32 = arith.constant 0 : i32
    %c0_i32_0 = arith.constant 0 : i32
    %c0_i32_1 = arith.constant 0 : i32
    return %c0_i32, %c0_i32_0 : i32, i32
  }
  func.func @transform_2(%arg0: i32) -> (i32, i32) {
    %c0_i32 = arith.constant 0 : i32
    %c0_i32_0 = arith.constant 0 : i32
    %c0_i32_1 = arith.constant 0 : i32
    return %c0_i32, %c0_i32_0 : i32, i32
  }
  func.func @transform_3(%arg0: i32) -> (i32, i32, i32) {
    %c0_i32 = arith.constant 0 : i32
    %c0_i32_0 = arith.constant 0 : i32
    %c0_i32_1 = arith.constant 0 : i32
    %c0_i32_2 = arith.constant 0 : i32
    return %c0_i32, %c0_i32_0, %c0_i32_1 : i32, i32, i32
  }
  func.func @transform_4(%arg0: i32) -> (i32, i32, i32) {
    %c0_i32 = arith.constant 0 : i32
    %c0_i32_0 = arith.constant 0 : i32
    %c0_i32_1 = arith.constant 0 : i32
    return %arg0, %c0_i32, %c0_i32_0 : i32, i32, i32
  }
}

</mosaic_0001>

<llo_original>
// kernel: tpu_custom_call.1
$region0: #{tpu_custom_call.1}
  #allocation0 [shape = 'u32[]', space=smem, size = 0x4, offset = 0x4, fixed_abs, tag = 'smem constant byte address 0x4 - core index']
  #allocation1 [shape = 'u32[144,128]{1,0:T(1,128)}', space=vmem, size = 0x12000, scoped, tag = 'internal scratch']
  %s0 = inlined_call_operand.hbm [shape: f32[2,32,256], index: 0, kind: input, shape index: {}]
  %s1 = inlined_call_operand.vmem [shape: f32[19,32], index: 1, kind: input, shape index: {}]
  %s2 = inlined_call_operand.vmem [shape: f32[3,16], index: 2, kind: input, shape index: {}]
  %s3 = inlined_call_operand.vmem [shape: f32[2,32,8], index: 3, kind: input, shape index: {}]
  %s4 = inlined_call_operand.hbm [shape: f32[2,32,256], index: 4, kind: output, shape index: {}]
  %s5 = sld [smem:[#allocation0]]
  $region30: #{tpu_custom_call.1} parent=0
    _
  %s7 = ssub.s32 1, %s5
  %s8 = scalar_select 0, %s7, %s5
  $region1: #{tpu_custom_call.1} parent=0
    #allocation2 [shape = 'u8[65536]{0}', space=vmem, size = 0x10000, scoped, tag = 'input window, operand 0, single buffered']
    #allocation3 [shape = 's32[1]{0}', space=sflag, size = 0x4, scoped, tag = 'scoped memory for tpu_custom_call.1']
    #allocation4 [shape = 's32[1]{0}', space=sflag, size = 0x4, scoped, tag = 'scoped memory for tpu_custom_call.1']
    #allocation5 [shape = 'u8[65536]{0}', space=vmem, size = 0x10000, scoped, tag = 'output window, operand 0, single buffered']
    %9 = vsyncpa [#allocation3], 0
    %10 = vsyncpa [#allocation4], 0
    // Predicated region
    $region2: #{tpu_custom_call.1} parent=1 // pred_check
      _
    $region3: #{tpu_custom_call.1} parent=1 // pred_check_branch
      %12 = sbr.rel (0) target = $region5
    $region4: #{tpu_custom_call.1} parent=1 // pred_region
      %s14 = ssub.s32 2048, 2048
      %15 = vsyncadd [#allocation3], %s14
      %s16 = sshll.u32 [#allocation2], 4
      %s17 = int_to_ptr.vmem [resolvable:$true] %s16
      %22 = dma.hbm_to_vmem [thread:$0]  %s0, 2048, %s17, [#allocation3], 256, 256, 16
    $region5: #{tpu_custom_call.1} parent=1 // pred_fallthru
      _
    // Predicated region
    $region6: #{tpu_custom_call.1} parent=1 // pred_check
      _
    $region7: #{tpu_custom_call.1} parent=1 // pred_check_branch
      %24 = sbr.rel (0) target = $region9
    $region8: #{tpu_custom_call.1} parent=1 // pred_region
      _
    $region9: #{tpu_custom_call.1} parent=1 // pred_fallthru
      _
    // Predicated region
    $region10: #{tpu_custom_call.1} parent=1 // pred_check
      _
    $region11: #{tpu_custom_call.1} parent=1 // pred_check_branch
      %26 = sbr.rel (0) target = $region13
    $region12: #{tpu_custom_call.1} parent=1 // pred_region
      _
    $region13: #{tpu_custom_call.1} parent=1 // pred_fallthru
      _
    // Predicated region
    $region14: #{tpu_custom_call.1} parent=1 // pred_check
      _
    $region15: #{tpu_custom_call.1} parent=1 // pred_check_branch
      %28 = sbr.rel (0) target = $region17
    $region16: #{tpu_custom_call.1} parent=1 // pred_region
      _
    $region17: #{tpu_custom_call.1} parent=1 // pred_fallthru
      _
    // Predicated region
    $region18: #{tpu_custom_call.1} parent=1 // pred_check
      _
    $region19: #{tpu_custom_call.1} parent=1 // pred_check_branch
      %30 = sbr.rel (0) target = $region21
    $region20: #{tpu_custom_call.1} parent=1 // pred_region
      %31 = dma.done [#allocation3], 2048
    $region21: #{tpu_custom_call.1} parent=1 // pred_fallthru
      _
    %v32 = vld [vmem:[#allocation2] sm:$0xff]
    %v33 = vld [vmem:[#allocation2 + $0x8] sm:$0xff]
    %v34 = vld [vmem:[#allocation2 + $0x10] sm:$0xff]
    %v35 = vld [vmem:[#allocation2 + $0x18] sm:$0xff]
    %v36 = vld [vmem:[#allocation2 + $0x20] sm:$0xff]
    %v37 = vld [vmem:[#allocation2 + $0x28] sm:$0xff]
    %v38 = vld [vmem:[#allocation2 + $0x30] sm:$0xff]
    %v39 = vld [vmem:[#allocation2 + $0x38] sm:$0xff]
    %v40 = vld [vmem:[#allocation2 + $0x40] sm:$0xff]
    %v41 = vld [vmem:[#allocation2 + $0x48] sm:$0xff]
    %v42 = vld [vmem:[#allocation2 + $0x50] sm:$0xff]
    %v43 = vld [vmem:[#allocation2 + $0x58] sm:$0xff]
    %v44 = vld [vmem:[#allocation2 + $0x60] sm:$0xff]
    %v45 = vld [vmem:[#allocation2 + $0x68] sm:$0xff]
    %v46 = vld [vmem:[#allocation2 + $0x70] sm:$0xff]
    %v47 = vld [vmem:[#allocation2 + $0x78] sm:$0xff]
    %v48 = vld [vmem:[%s1] sm:$0xff]
    %v49 = vld [vmem:[%s1 + $0x8] sm:$0xff]
    %v50 = vld [vmem:[%s1 + $0x10] sm:$0x7]
    %v51 = vld [vmem:[%s2] sm:$0x7]
    %v52 = vld [vmem:[%s3] sm:$0xff]
    %v53 = vld [vmem:[%s3 + $0x8] sm:$0xff]
    %v54 = vld [vmem:[%s3 + $0x10] sm:$0xff]
    %v55 = vld [vmem:[%s3 + $0x18] sm:$0xff]
    %v56 = vld [vmem:[%s3 + $0x20] sm:$0xff]
    %v57 = vld [vmem:[%s3 + $0x28] sm:$0xff]
    %v58 = vld [vmem:[%s3 + $0x30] sm:$0xff]
    %v59 = vld [vmem:[%s3 + $0x38] sm:$0xff]
    %vm60 = vcmask 261120
    %v62 = vsel %vm60, %v50, 0
    %64 = vmatprep.subr.mxu0 %v33
    %65 = vmatpush1.msra.mxu0 %v32
    %66 = vmatprep.subr.mxu0 %v35
    %67 = vmatpush1.msra.mxu0 %v34
    %68 = vmatprep.subr.mxu0 %v37
    %69 = vmatpush1.msra.mxu0 %v36
    %70 = vmatprep.subr.mxu0 %v39
    %71 = vmatpush1.msra.mxu0 %v38
    %72 = vmatprep.subr.mxu0 0.0
    %73 = vmatpush1.msra.mxu0 0.0
    %74 = vmatprep.subr.mxu0 0.0
    %75 = vmatpush1.msra.mxu0 0.0
    %76 = vmatprep.subr.mxu0 0.0
    %77 = vmatpush1.msra.mxu0 0.0
    %78 = vmatprep.subr.mxu0 0.0
    %79 = vmatpush1.msra.mxu0 0.0
    %80 = vmatprep.subr.mxu0 0.0
    %81 = vmatpush1.msra.mxu0 0.0
    %82 = vmatprep.subr.mxu0 0.0
    %83 = vmatpush1.msra.mxu0 0.0
    %84 = vmatprep.subr.mxu0 0.0
    %85 = vmatpush1.msra.mxu0 0.0
    %86 = vmatprep.subr.mxu0 0.0
    %87 = vmatpush1.msra.mxu0 0.0
    %88 = vmatprep.subr.mxu0 0.0
    %89 = vmatpush1.msra.mxu0 0.0
    %90 = vmatprep.subr.mxu0 0.0
    %91 = vmatpush1.msra.mxu0 0.0
    %92 = vmatprep.subr.mxu0 0.0
    %93 = vmatpush1.msra.mxu0 0.0
    %94 = vmatprep.subr.mxu0 0.0
    %95 = vmatpush1.msra.mxu0 0.0
    %96 = vmatprep.subr.mxu0 0.0
    %97 = vmatpush1.msra.mxu0 0.0
    %98 = vmatprep.subr.mxu0 0.0
    %99 = vmatpush1.msra.mxu0 0.0
    %100 = vmatprep.subr.mxu0 0.0
    %101 = vmatpush1.msra.mxu0 0.0
    %102 = vmatprep.subr.mxu0 0.0
    %103 = vmatpush1.msra.mxu0 0.0
    %104 = vmatprep.subr.mxu0 0.0
    %105 = vmatpush1.msra.mxu0 0.0
    %106 = vmatprep.subr.mxu0 0.0
    %107 = vmatpush1.msra.mxu0 0.0
    %108 = vmatprep.subr.mxu0 0.0
    %109 = vmatpush1.msra.mxu0 0.0
    %110 = vmatprep.subr.mxu0 0.0
    %111 = vmatpush1.msra.mxu0 0.0
    %112 = vmatprep.subr.mxu0 0.0
    %113 = vmatpush1.msra.mxu0 0.0
    %114 = vmatprep.subr.mxu0 0.0
    %115 = vmatpush1.msra.mxu0 0.0
    %116 = vmatprep.subr.mxu0 0.0
    %117 = vmatpush1.msra.mxu0 0.0
    %118 = vmatprep.subr.mxu0 0.0
    %119 = vmatpush1.msra.mxu0 0.0
    %120 = vmatprep.subr.mxu0 0.0
    %121 = vmatpush1.msra.mxu0 0.0
    %122 = vmatprep.subr.mxu0 0.0
    %123 = vmatpush1.msra.mxu0 0.0
    %124 = vmatprep.subr.mxu0 0.0
    %125 = vmatpush1.msra.mxu0 0.0
    %126 = vmatprep.subr.mxu0 0.0
    %127 = vmatpush1.msra.mxu0 0.0
    %128 = vmatprep.mubr.f32.mxu0 0.0
    %129 = vmatmul.mubr.f32.gmra.mrb[0].mxu0 %v62
    %v130 = vpop.f32.mrb[0].mxu0
    %v131 = vadd.f32 0.0, %v130
    %v132 = vpop.f32.mrb[0].mxu0
    %v133 = vadd.f32 0.0, %v132
    %134 = vdwg.mxu0
    %vm135 = vcmask 1040384
    %v136 = vsel %vm135, %v131, -inf
    %v137 = vsel %vm135, %v133, -inf
    %v138 = vmax.f32 %v136, %v137
    %139 = vmax.xlane.f32.xlu0 %v138
    %v140 = vpop.xlane.xlu0 %139
    %v141 = vsub.f32 %v131, %v140
    %v142 = vsub.f32 %v133, %v140
    %v143 = vmul.f32 %v141, 1.442695
    %v144 = vpow.pop %v143
    %v145 = vmul.f32 %v142, 1.442695
    %v146 = vpow.pop %v145
    %147 = vmatprep.subr.mxu0 %v33
    %148 = vmatpush1.xpose.msra.mxu0 %v32
    %149 = vmatprep.subr.mxu0 %v35
    %150 = vmatpush1.xpose.msra.mxu0 %v34
    %151 = vmatprep.subr.mxu0 %v37
    %152 = vmatpush1.xpose.msra.mxu0 %v36
    %153 = vmatprep.subr.mxu0 %v39
    %154 = vmatpush1.xpose.msra.mxu0 %v38
    %155 = vmatprep.subr.mxu0 0.0
    %156 = vmatpush1.xpose.msra.mxu0 0.0
    %157 = vmatprep.subr.mxu0 0.0
    %158 = vmatpush1.xpose.msra.mxu0 0.0
    %159 = vmatprep.subr.mxu0 0.0
    %160 = vmatpush1.xpose.msra.mxu0 0.0
    %161 = vmatprep.subr.mxu0 0.0
    %162 = vmatpush1.xpose.msra.mxu0 0.0
    %163 = vmatprep.subr.mxu0 0.0
    %164 = vmatpush1.xpose.msra.mxu0 0.0
    %165 = vmatprep.subr.mxu0 0.0
    %166 = vmatpush1.xpose.msra.mxu0 0.0
    %167 = vmatprep.subr.mxu0 0.0
    %168 = vmatpush1.xpose.msra.mxu0 0.0
    %169 = vmatprep.subr.mxu0 0.0
    %170 = vmatpush1.xpose.msra.mxu0 0.0
    %171 = vmatprep.subr.mxu0 0.0
    %172 = vmatpush1.xpose.msra.mxu0 0.0
    %173 = vmatprep.subr.mxu0 0.0
    %174 = vmatpush1.xpose.msra.mxu0 0.0
    %175 = vmatprep.subr.mxu0 0.0
    %176 = vmatpush1.xpose.msra.mxu0 0.0
    %177 = vmatprep.subr.mxu0 0.0
    %178 = vmatpush1.xpose.msra.mxu0 0.0
    %179 = vmatprep.subr.mxu0 0.0
    %180 = vmatpush1.xpose.msra.mxu0 0.0
    %181 = vmatprep.subr.mxu0 0.0
    %182 = vmatpush1.xpose.msra.mxu0 0.0
    %183 = vmatprep.subr.mxu0 0.0
    %184 = vmatpush1.xpose.msra.mxu0 0.0
    %185 = vmatprep.subr.mxu0 0.0
    %186 = vmatpush1.xpose.msra.mxu0 0.0
    %187 = vmatprep.subr.mxu0 0.0
    %188 = vmatpush1.xpose.msra.mxu0 0.0
    %189 = vmatprep.subr.mxu0 0.0
    %190 = vmatpush1.xpose.msra.mxu0 0.0
    %191 = vmatprep.subr.mxu0 0.0
    %192 = vmatpush1.xpose.msra.mxu0 0.0
    %193 = vmatprep.subr.mxu0 0.0
    %194 = vmatpush1.xpose.msra.mxu0 0.0
    %195 = vmatprep.subr.mxu0 0.0
    %196 = vmatpush1.xpose.msra.mxu0 0.0
    %197 = vmatprep.subr.mxu0 0.0
    %198 = vmatpush1.xpose.msra.mxu0 0.0
    %199 = vmatprep.subr.mxu0 0.0
    %200 = vmatpush1.xpose.msra.mxu0 0.0
    %201 = vmatprep.subr.mxu0 0.0
    %202 = vmatpush1.xpose.msra.mxu0 0.0
    %203 = vmatprep.subr.mxu0 0.0
    %204 = vmatpush1.xpose.msra.mxu0 0.0
    %205 = vmatprep.subr.mxu0 0.0
    %206 = vmatpush1.xpose.msra.mxu0 0.0
    %207 = vmatprep.subr.mxu0 0.0
    %208 = vmatpush1.xpose.msra.mxu0 0.0
    %209 = vmatprep.subr.mxu0 0.0
    %210 = vmatpush1.xpose.msra.mxu0 0.0
    %211 = vmatprep.mubr.f32.mxu0 %v146
    %212 = vmatmul.mubr.f32.gmra.mrb[0].mxu0 %v144
    %v213 = vpop.f32.mrb[0].mxu0
    %v214 = vadd.f32 0.0, %v213
    %v215 = vpop.f32.mrb[0].mxu0
    %216 = vdwg.mxu0
    %v217 = vsel %vm135, %v144, 0.0
    %v218 = vsel %vm135, %v146, 0.0
    %v219 = vadd.f32 %v217, %v218
    %220 = vadd.xlane.f32.xlu0 %v219
    %v221 = vpop.xlane.xlu0 %220
    %v222 = vrcp.pop %v221
    %v223 = vmul.f32 1.0, %v222
    %v224 = vmul.f32 %v214, %v223
    %225 = vmatprep.subr.mxu0 %v41
    %226 = vmatpush1.msra.mxu0 %v40
    %227 = vmatprep.subr.mxu0 %v43
    %228 = vmatpush1.msra.mxu0 %v42
    %229 = vmatprep.subr.mxu0 %v45
    %230 = vmatpush1.msra.mxu0 %v44
    %231 = vmatprep.subr.mxu0 %v47
    %232 = vmatpush1.msra.mxu0 %v46
    %233 = vmatprep.subr.mxu0 0.0
    %234 = vmatpush1.msra.mxu0 0.0
    %235 = vmatprep.subr.mxu0 0.0
    %236 = vmatpush1.msra.mxu0 0.0
    %237 = vmatprep.subr.mxu0 0.0
    %238 = vmatpush1.msra.mxu0 0.0
    %239 = vmatprep.subr.mxu0 0.0
    %240 = vmatpush1.msra.mxu0 0.0
    %241 = vmatprep.subr.mxu0 0.0
    %242 = vmatpush1.msra.mxu0 0.0
    %243 = vmatprep.subr.mxu0 0.0
    %244 = vmatpush1.msra.mxu0 0.0
    %245 = vmatprep.subr.mxu0 0.0
    %246 = vmatpush1.msra.mxu0 0.0
    %247 = vmatprep.subr.mxu0 0.0
    %248 = vmatpush1.msra.mxu0 0.0
    %249 = vmatprep.subr.mxu0 0.0
    %250 = vmatpush1.msra.mxu0 0.0
    %251 = vmatprep.subr.mxu0 0.0
    %252 = vmatpush1.msra.mxu0 0.0
    %253 = vmatprep.subr.mxu0 0.0
    %254 = vmatpush1.msra.mxu0 0.0
    %255 = vmatprep.subr.mxu0 0.0
    %256 = vmatpush1.msra.mxu0 0.0
    %257 = vmatprep.subr.mxu0 0.0
    %258 = vmatpush1.msra.mxu0 0.0
    %259 = vmatprep.subr.mxu0 0.0
    %260 = vmatpush1.msra.mxu0 0.0
    %261 = vmatprep.subr.mxu0 0.0
    %262 = vmatpush1.msra.mxu0 0.0
    %263 = vmatprep.subr.mxu0 0.0
    %264 = vmatpush1.msra.mxu0 0.0
    %265 = vmatprep.subr.mxu0 0.0
    %266 = vmatpush1.msra.mxu0 0.0
    %267 = vmatprep.subr.mxu0 0.0
    %268 = vmatpush1.msra.mxu0 0.0
    %269 = vmatprep.subr.mxu0 0.0
    %270 = vmatpush1.msra.mxu0 0.0
    %271 = vmatprep.subr.mxu0 0.0
    %272 = vmatpush1.msra.mxu0 0.0
    %273 = vmatprep.subr.mxu0 0.0
    %274 = vmatpush1.msra.mxu0 0.0
    %275 = vmatprep.subr.mxu0 0.0
    %276 = vmatpush1.msra.mxu0 0.0
    %277 = vmatprep.subr.mxu0 0.0
    %278 = vmatpush1.msra.mxu0 0.0
    %279 = vmatprep.subr.mxu0 0.0
    %280 = vmatpush1.msra.mxu0 0.0
    %281 = vmatprep.subr.mxu0 0.0
    %282 = vmatpush1.msra.mxu0 0.0
    %283 = vmatprep.subr.mxu0 0.0
    %284 = vmatpush1.msra.mxu0 0.0
    %285 = vmatprep.subr.mxu0 0.0
    %286 = vmatpush1.msra.mxu0 0.0
    %287 = vmatprep.subr.mxu0 0.0
    %288 = vmatpush1.msra.mxu0 0.0
    %289 = vmatprep.mubr.f32.mxu0 0.0
    %290 = vmatmul.mubr.f32.gmra.mrb[0].mxu0 %v62
    %v291 = vpop.f32.mrb[0].mxu0
    %v292 = vadd.f32 0.0, %v291
    %v293 = vpop.f32.mrb[0].mxu0
    %v294 = vadd.f32 0.0, %v293
    %295 = vdwg.mxu0
    %v296 = vsel %vm135, %v292, -inf
    %v297 = vsel %vm135, %v294, -inf
    %v298 = vmax.f32 %v296, %v297
    %299 = vmax.xlane.f32.xlu0 %v298
    %v300 = vpop.xlane.xlu0 %299
    %v301 = vsub.f32 %v292, %v300
    %v302 = vsub.f32 %v294, %v300
    %v303 = vmul.f32 %v301, 1.442695
    %v304 = vpow.pop %v303
    %v305 = vmul.f32 %v302, 1.442695
    %v306 = vpow.pop %v305
    %307 = vmatprep.subr.mxu0 %v41
    %308 = vmatpush1.xpose.msra.mxu0 %v40
    %309 = vmatprep.subr.mxu0 %v43
    %310 = vmatpush1.xpose.msra.mxu0 %v42
    %311 = vmatprep.subr.mxu0 %v45
    %312 = vmatpush1.xpose.msra.mxu0 %v44
    %313 = vmatprep.subr.mxu0 %v47
    %314 = vmatpush1.xpose.msra.mxu0 %v46
    %315 = vmatprep.subr.mxu0 0.0
    %316 = vmatpush1.xpose.msra.mxu0 0.0
    %317 = vmatprep.subr.mxu0 0.0
    %318 = vmatpush1.xpose.msra.mxu0 0.0
    %319 = vmatprep.subr.mxu0 0.0
    %320 = vmatpush1.xpose.msra.mxu0 0.0
    %321 = vmatprep.subr.mxu0 0.0
    %322 = vmatpush1.xpose.msra.mxu0 0.0
    %323 = vmatprep.subr.mxu0 0.0
    %324 = vmatpush1.xpose.msra.mxu0 0.0
    %325 = vmatprep.subr.mxu0 0.0
    %326 = vmatpush1.xpose.msra.mxu0 0.0
    %327 = vmatprep.subr.mxu0 0.0
    %328 = vmatpush1.xpose.msra.mxu0 0.0
    %329 = vmatprep.subr.mxu0 0.0
    %330 = vmatpush1.xpose.msra.mxu0 0.0
    %331 = vmatprep.subr.mxu0 0.0
    %332 = vmatpush1.xpose.msra.mxu0 0.0
    %333 = vmatprep.subr.mxu0 0.0
    %334 = vmatpush1.xpose.msra.mxu0 0.0
    %335 = vmatprep.subr.mxu0 0.0
    %336 = vmatpush1.xpose.msra.mxu0 0.0
    %337 = vmatprep.subr.mxu0 0.0
    %338 = vmatpush1.xpose.msra.mxu0 0.0
    %339 = vmatprep.subr.mxu0 0.0
    %340 = vmatpush1.xpose.msra.mxu0 0.0
    %341 = vmatprep.subr.mxu0 0.0
    %342 = vmatpush1.xpose.msra.mxu0 0.0
    %343 = vmatprep.subr.mxu0 0.0
    %344 = vmatpush1.xpose.msra.mxu0 0.0
    %345 = vmatprep.subr.mxu0 0.0
    %346 = vmatpush1.xpose.msra.mxu0 0.0
    %347 = vmatprep.subr.mxu0 0.0
    %348 = vmatpush1.xpose.msra.mxu0 0.0
    %349 = vmatprep.subr.mxu0 0.0
    %350 = vmatpush1.xpose.msra.mxu0 0.0
    %351 = vmatprep.subr.mxu0 0.0
    %352 = vmatpush1.xpose.msra.mxu0 0.0
    %353 = vmatprep.subr.mxu0 0.0
    %354 = vmatpush1.xpose.msra.mxu0 0.0
    %355 = vmatprep.subr.mxu0 0.0
    %356 = vmatpush1.xpose.msra.mxu0 0.0
    %357 = vmatprep.subr.mxu0 0.0
    %358 = vmatpush1.xpose.msra.mxu0 0.0
    %359 = vmatprep.subr.mxu0 0.0
    %360 = vmatpush1.xpose.msra.mxu0 0.0
    %361 = vmatprep.subr.mxu0 0.0
    %362 = vmatpush1.xpose.msra.mxu0 0.0
    %363 = vmatprep.subr.mxu0 0.0
    %364 = vmatpush1.xpose.msra.mxu0 0.0
    %365 = vmatprep.subr.mxu0 0.0
    %366 = vmatpush1.xpose.msra.mxu0 0.0
    %367 = vmatprep.subr.mxu0 0.0
    %368 = vmatpush1.xpose.msra.mxu0 0.0
    %369 = vmatprep.subr.mxu0 0.0
    %370 = vmatpush1.xpose.msra.mxu0 0.0
    %371 = vmatprep.mubr.f32.mxu0 %v306
    %372 = vmatmul.mubr.f32.gmra.mrb[0].mxu0 %v304
    %v373 = vpop.f32.mrb[0].mxu0
    %v374 = vadd.f32 0.0, %v373
    %v375 = vpop.f32.mrb[0].mxu0
    %376 = vdwg.mxu0
    %v377 = vsel %vm135, %v304, 0.0
    %v378 = vsel %vm135, %v306, 0.0
    %v379 = vadd.f32 %v377, %v378
    %380 = vadd.xlane.f32.xlu0 %v379
    %v381 = vpop.xlane.xlu0 %380
    %v382 = vrcp.pop %v381
    %v383 = vmul.f32 1.0, %v382
    %v384 = vmul.f32 %v374, %v383
    %v386 = vrot.slane %v384, 7
    %v388 = vsel %vm135, %v224, %v386
    %v389 = vlaneseq
    %v390 = vshrl.u32 %v389, 7
    %v391 = vsub.s32 0, %v390
    %v392 = vrot.slane %v51, %v391
    %v394 = vsel %vm60, %v388, 0
    %v397 = vsel %vm60, %v48, 0
    %v400 = vsel %vm60, %v49, 0
    %402 = vmatprep.subr.mxu0 0.0
    %403 = vmatpush1.xpose.msra.mxu0 %v397
    %404 = vmatprep.subr.mxu0 0.0
    %405 = vmatpush1.xpose.msra.mxu0 %v400
    %406 = vmatprep.subr.mxu0 0.0
    %407 = vmatpush1.xpose.msra.mxu0 0.0
    %408 = vmatprep.subr.mxu0 0.0
    %409 = vmatpush1.xpose.msra.mxu0 0.0
    %410 = vmatprep.subr.mxu0 0.0
    %411 = vmatpush1.xpose.msra.mxu0 0.0
    %412 = vmatprep.subr.mxu0 0.0
    %413 = vmatpush1.xpose.msra.mxu0 0.0
    %414 = vmatprep.subr.mxu0 0.0
    %415 = vmatpush1.xpose.msra.mxu0 0.0
    %416 = vmatprep.subr.mxu0 0.0
    %417 = vmatpush1.xpose.msra.mxu0 0.0
    %418 = vmatprep.subr.mxu0 0.0
    %419 = vmatpush1.xpose.msra.mxu0 0.0
    %420 = vmatprep.subr.mxu0 0.0
    %421 = vmatpush1.xpose.msra.mxu0 0.0
    %422 = vmatprep.subr.mxu0 0.0
    %423 = vmatpush1.xpose.msra.mxu0 0.0
    %424 = vmatprep.subr.mxu0 0.0
    %425 = vmatpush1.xpose.msra.mxu0 0.0
    %426 = vmatprep.subr.mxu0 0.0
    %427 = vmatpush1.xpose.msra.mxu0 0.0
    %428 = vmatprep.subr.mxu0 0.0
    %429 = vmatpush1.xpose.msra.mxu0 0.0
    %430 = vmatprep.subr.mxu0 0.0
    %431 = vmatpush1.xpose.msra.mxu0 0.0
    %432 = vmatprep.subr.mxu0 0.0
    %433 = vmatpush1.xpose.msra.mxu0 0.0
    %434 = vmatprep.subr.mxu0 0.0
    %435 = vmatpush1.xpose.msra.mxu0 0.0
    %436 = vmatprep.subr.mxu0 0.0
    %437 = vmatpush1.xpose.msra.mxu0 0.0
    %438 = vmatprep.subr.mxu0 0.0
    %439 = vmatpush1.xpose.msra.mxu0 0.0
    %440 = vmatprep.subr.mxu0 0.0
    %441 = vmatpush1.xpose.msra.mxu0 0.0
    %442 = vmatprep.subr.mxu0 0.0
    %443 = vmatpush1.xpose.msra.mxu0 0.0
    %444 = vmatprep.subr.mxu0 0.0
    %445 = vmatpush1.xpose.msra.mxu0 0.0
    %446 = vmatprep.subr.mxu0 0.0
    %447 = vmatpush1.xpose.msra.mxu0 0.0
    %448 = vmatprep.subr.mxu0 0.0
    %449 = vmatpush1.xpose.msra.mxu0 0.0
    %450 = vmatprep.subr.mxu0 0.0
    %451 = vmatpush1.xpose.msra.mxu0 0.0
    %452 = vmatprep.subr.mxu0 0.0
    %453 = vmatpush1.xpose.msra.mxu0 0.0
    %454 = vmatprep.subr.mxu0 0.0
    %455 = vmatpush1.xpose.msra.mxu0 0.0
    %456 = vmatprep.subr.mxu0 0.0
    %457 = vmatpush1.xpose.msra.mxu0 0.0
    %458 = vmatprep.subr.mxu0 0.0
    %459 = vmatpush1.xpose.msra.mxu0 0.0
    %460 = vmatprep.subr.mxu0 0.0
    %461 = vmatpush1.xpose.msra.mxu0 0.0
    %462 = vmatprep.subr.mxu0 0.0
    %463 = vmatpush1.xpose.msra.mxu0 0.0
    %464 = vmatprep.subr.mxu0 0.0
    %465 = vmatpush1.xpose.msra.mxu0 0.0
    %466 = vmatprep.mubr.f32.mxu0 0.0
    %467 = vmatmul.mubr.f32.gmra.mrb[0].mxu0 %v394
    %v468 = vpop.f32.mrb[0].mxu0
    %v469 = vadd.f32 %v392, %v468
    %v470 = vpop.f32.mrb[0].mxu0
    %471 = vdwg.mxu0
    %vm472 = vcmask 58368
    %v473 = vsel %vm472, %v469, 0.0
    %474 = vadd.xlane.f32.xlu0 %v473
    %v475 = vpop.xlane.xlu0 %474
    %v476 = vrcp.pop 8.0
    %v477 = vmul.f32 %v475, %v476
    %v478 = vsub.f32 %v469, %v477
    %v479 = vmul.f32 %v478, %v478
    %v480 = vsel %vm472, %v479, 0.0
    %481 = vadd.xlane.f32.xlu0 %v480
    %v482 = vpop.xlane.xlu0 %481
    %v483 = vmul.f32 %v482, %v476
    %v484 = vadd.f32 %v483, 1e-05
    %v485 = vrsqrt.pop %v484
    %v486 = vmul.f32 %v478, %v485
    %v487 = vlaneseq
    %v488 = vshrl.u32 %v487, 7
    %v489 = vsub.s32 1, %v488
    %v490 = vrot.slane %v51, %v489
    %v491 = vmul.f32 %v486, %v490
    %v492 = vlaneseq
    %v493 = vshrl.u32 %v492, 7
    %v494 = vsub.s32 2, %v493
    %v495 = vrot.slane %v51, %v494
    %v496 = vadd.f32 %v491, %v495
    %v497 = vmax.f32 %v496, 0.0
    %v498 = vlaneseq
    %v499 = vshrl.u32 %v498, 7
    %v500 = vsub.s32 1, %v499
    %v501 = vrot.slane %v50, %v500
    %vm502 = vcmask 64512
    %v504 = vsel %vm502, %v497, 0
    %v507 = vsel %vm502, %v52, 0
    %v510 = vsel %vm502, %v53, 0
    %v513 = vsel %vm502, %v54, 0
    %v516 = vsel %vm502, %v55, 0
    %518 = vmatprep.subr.mxu0 0.0
    %519 = vmatpush1.xpose.msra.mxu0 %v507
    %520 = vmatprep.subr.mxu0 0.0
    %521 = vmatpush1.xpose.msra.mxu0 %v510
    %522 = vmatprep.subr.mxu0 0.0
    %523 = vmatpush1.xpose.msra.mxu0 %v513
    %524 = vmatprep.subr.mxu0 0.0
    %525 = vmatpush1.xpose.msra.mxu0 %v516
    %526 = vmatprep.subr.mxu0 0.0
    %527 = vmatpush1.xpose.msra.mxu0 0.0
    %528 = vmatprep.subr.mxu0 0.0
    %529 = vmatpush1.xpose.msra.mxu0 0.0
    %530 = vmatprep.subr.mxu0 0.0
    %531 = vmatpush1.xpose.msra.mxu0 0.0
    %532 = vmatprep.subr.mxu0 0.0
    %533 = vmatpush1.xpose.msra.mxu0 0.0
    %534 = vmatprep.subr.mxu0 0.0
    %535 = vmatpush1.xpose.msra.mxu0 0.0
    %536 = vmatprep.subr.mxu0 0.0
    %537 = vmatpush1.xpose.msra.mxu0 0.0
    %538 = vmatprep.subr.mxu0 0.0
    %539 = vmatpush1.xpose.msra.mxu0 0.0
    %540 = vmatprep.subr.mxu0 0.0
    %541 = vmatpush1.xpose.msra.mxu0 0.0
    %542 = vmatprep.subr.mxu0 0.0
    %543 = vmatpush1.xpose.msra.mxu0 0.0
    %544 = vmatprep.subr.mxu0 0.0
    %545 = vmatpush1.xpose.msra.mxu0 0.0
    %546 = vmatprep.subr.mxu0 0.0
    %547 = vmatpush1.xpose.msra.mxu0 0.0
    %548 = vmatprep.subr.mxu0 0.0
    %549 = vmatpush1.xpose.msra.mxu0 0.0
    %550 = vmatprep.subr.mxu0 0.0
    %551 = vmatpush1.xpose.msra.mxu0 0.0
    %552 = vmatprep.subr.mxu0 0.0
    %553 = vmatpush1.xpose.msra.mxu0 0.0
    %554 = vmatprep.subr.mxu0 0.0
    %555 = vmatpush1.xpose.msra.mxu0 0.0
    %556 = vmatprep.subr.mxu0 0.0
    %557 = vmatpush1.xpose.msra.mxu0 0.0
    %558 = vmatprep.subr.mxu0 0.0
    %559 = vmatpush1.xpose.msra.mxu0 0.0
    %560 = vmatprep.subr.mxu0 0.0
    %561 = vmatpush1.xpose.msra.mxu0 0.0
    %562 = vmatprep.subr.mxu0 0.0
    %563 = vmatpush1.xpose.msra.mxu0 0.0
    %564 = vmatprep.subr.mxu0 0.0
    %565 = vmatpush1.xpose.msra.mxu0 0.0
    %566 = vmatprep.subr.mxu0 0.0
    %567 = vmatpush1.xpose.msra.mxu0 0.0
    %568 = vmatprep.subr.mxu0 0.0
    %569 = vmatpush1.xpose.msra.mxu0 0.0
    %570 = vmatprep.subr.mxu0 0.0
    %571 = vmatpush1.xpose.msra.mxu0 0.0
    %572 = vmatprep.subr.mxu0 0.0
    %573 = vmatpush1.xpose.msra.mxu0 0.0
    %574 = vmatprep.subr.mxu0 0.0
    %575 = vmatpush1.xpose.msra.mxu0 0.0
    %576 = vmatprep.subr.mxu0 0.0
    %577 = vmatpush1.xpose.msra.mxu0 0.0
    %578 = vmatprep.subr.mxu0 0.0
    %579 = vmatpush1.xpose.msra.mxu0 0.0
    %580 = vmatprep.subr.mxu0 0.0
    %581 = vmatpush1.xpose.msra.mxu0 0.0
    %582 = vmatprep.mubr.f32.mxu0 0.0
    %583 = vmatmul.mubr.f32.gmra.mrb[0].mxu0 %v504
    %v584 = vpop.f32.mrb[0].mxu0
    %v585 = vadd.f32 %v501, %v584
    %v586 = vpop.f32.mrb[0].mxu0
    %587 = vdwg.mxu0
    %589 = vrot.lane.b32.xlu0 %v469, 120
    %v590 = vpop.permute.xlu0 %589
    %v592 = vsel %vm472, %v590, 0.0
    %593 = vadd.xlane.f32.xlu0 %v592
    %v594 = vpop.xlane.xlu0 %593
    %v595 = vmul.f32 %v594, %v476
    %v596 = vsub.f32 %v469, %v595
    %v597 = vmul.f32 %v596, %v596
    %599 = vrot.lane.b32.xlu0 %v597, 120
    %v600 = vpop.permute.xlu0 %599
    %v602 = vsel %vm472, %v600, 0.0
    %603 = vadd.xlane.f32.xlu0 %v602
    %v604 = vpop.xlane.xlu0 %603
    %v605 = vmul.f32 %v604, %v476
    %v606 = vadd.f32 %v605, 1e-05
    %v607 = vrsqrt.pop %v606
    %v608 = vmul.f32 %v596, %v607
    %v609 = vmul.f32 %v608, %v490
    %v610 = vadd.f32 %v609, %v495
    %v611 = vmax.f32 %v610, 0.0
    %v612 = vlaneseq
    %v613 = vshrl.u32 %v612, 7
    %v614 = vsub.s32 2, %v613
    %v615 = vrot.slane %v50, %v614
    %617 = vrot.lane.b32.xlu0 %v611, 120
    %v618 = vpop.permute.xlu0 %617
    %v619 = vsel %vm502, %v618, 0
    %v622 = vsel %vm502, %v56, 0
    %v625 = vsel %vm502, %v57, 0
    %v628 = vsel %vm502, %v58, 0
    %v631 = vsel %vm502, %v59, 0
    %633 = vmatprep.subr.mxu0 0.0
    %634 = vmatpush1.xpose.msra.mxu0 %v622
    %635 = vmatprep.subr.mxu0 0.0
    %636 = vmatpush1.xpose.msra.mxu0 %v625
    %637 = vmatprep.subr.mxu0 0.0
    %638 = vmatpush1.xpose.msra.mxu0 %v628
    %639 = vmatprep.subr.mxu0 0.0
    %640 = vmatpush1.xpose.msra.mxu0 %v631
    %641 = vmatprep.subr.mxu0 0.0
    %642 = vmatpush1.xpose.msra.mxu0 0.0
    %643 = vmatprep.subr.mxu0 0.0
    %644 = vmatpush1.xpose.msra.mxu0 0.0
    %645 = vmatprep.subr.mxu0 0.0
    %646 = vmatpush1.xpose.msra.mxu0 0.0
    %647 = vmatprep.subr.mxu0 0.0
    %648 = vmatpush1.xpose.msra.mxu0 0.0
    %649 = vmatprep.subr.mxu0 0.0
    %650 = vmatpush1.xpose.msra.mxu0 0.0
    %651 = vmatprep.subr.mxu0 0.0
    %652 = vmatpush1.xpose.msra.mxu0 0.0
    %653 = vmatprep.subr.mxu0 0.0
    %654 = vmatpush1.xpose.msra.mxu0 0.0
    %655 = vmatprep.subr.mxu0 0.0
    %656 = vmatpush1.xpose.msra.mxu0 0.0
    %657 = vmatprep.subr.mxu0 0.0
    %658 = vmatpush1.xpose.msra.mxu0 0.0
    %659 = vmatprep.subr.mxu0 0.0
    %660 = vmatpush1.xpose.msra.mxu0 0.0
    %661 = vmatprep.subr.mxu0 0.0
    %662 = vmatpush1.xpose.msra.mxu0 0.0
    %663 = vmatprep.subr.mxu0 0.0
    %664 = vmatpush1.xpose.msra.mxu0 0.0
    %665 = vmatprep.subr.mxu0 0.0
    %666 = vmatpush1.xpose.msra.mxu0 0.0
    %667 = vmatprep.subr.mxu0 0.0
    %668 = vmatpush1.xpose.msra.mxu0 0.0
    %669 = vmatprep.subr.mxu0 0.0
    %670 = vmatpush1.xpose.msra.mxu0 0.0
    %671 = vmatprep.subr.mxu0 0.0
    %672 = vmatpush1.xpose.msra.mxu0 0.0
    %673 = vmatprep.subr.mxu0 0.0
    %674 = vmatpush1.xpose.msra.mxu0 0.0
    %675 = vmatprep.subr.mxu0 0.0
    %676 = vmatpush1.xpose.msra.mxu0 0.0
    %677 = vmatprep.subr.mxu0 0.0
    %678 = vmatpush1.xpose.msra.mxu0 0.0
    %679 = vmatprep.subr.mxu0 0.0
    %680 = vmatpush1.xpose.msra.mxu0 0.0
    %681 = vmatprep.subr.mxu0 0.0
    %682 = vmatpush1.xpose.msra.mxu0 0.0
    %683 = vmatprep.subr.mxu0 0.0
    %684 = vmatpush1.xpose.msra.mxu0 0.0
    %685 = vmatprep.subr.mxu0 0.0
    %686 = vmatpush1.xpose.msra.mxu0 0.0
    %687 = vmatprep.subr.mxu0 0.0
    %688 = vmatpush1.xpose.msra.mxu0 0.0
    %689 = vmatprep.subr.mxu0 0.0
    %690 = vmatpush1.xpose.msra.mxu0 0.0
    %691 = vmatprep.subr.mxu0 0.0
    %692 = vmatpush1.xpose.msra.mxu0 0.0
    %693 = vmatprep.subr.mxu0 0.0
    %694 = vmatpush1.xpose.msra.mxu0 0.0
    %695 = vmatprep.subr.mxu0 0.0
    %696 = vmatpush1.xpose.msra.mxu0 0.0
    %697 = vmatprep.mubr.f32.mxu0 0.0
    %698 = vmatmul.mubr.f32.gmra.mrb[0].mxu0 %v619
    %v699 = vpop.f32.mrb[0].mxu0
    %v700 = vadd.f32 %v615, %v699
    %v701 = vpop.f32.mrb[0].mxu0
    %702 = vdwg.mxu0
    %v703 = vxor.u32 %v700, 2147483648
    %v704 = vmul.f32 %v703, 1.442695
    %v705 = vpow.pop %v704
    %v706 = vadd.f32 %v705, 1.0
    %v707 = vrcp.pop %v706
    %v708 = vmul.f32 1.0, %v707
    %v709 = vlaneseq
    %v710 = vshrl.u32 %v709, 7
    %v711 = vsub.s32 0, %v710
    %v712 = vrot.slane %v708, %v711
    %714 = vbcast.lane.b32.xlu0 %v712, 256
    %v715 = vpop.permute.xlu0 %714
    %s717 = sor.u32 256, 8
    %718 = vbcast.lane.b32.xlu0 %v712, %s717
    %v719 = vpop.permute.xlu0 %718
    %s721 = sor.u32 256, 16
    %722 = vbcast.lane.b32.xlu0 %v712, %s721
    %v723 = vpop.permute.xlu0 %722
    %s725 = sor.u32 256, 24
    %726 = vbcast.lane.b32.xlu0 %v712, %s725
    %v727 = vpop.permute.xlu0 %726
    %v728 = vlaneseq
    %v729 = vshrl.u32 %v728, 7
    %v730 = vsub.s32 1, %v729
    %v731 = vrot.slane %v708, %v730
    %733 = vbcast.lane.b32.xlu0 %v731, 256
    %v734 = vpop.permute.xlu0 %733
    %s736 = sor.u32 256, 8
    %737 = vbcast.lane.b32.xlu0 %v731, %s736
    %v738 = vpop.permute.xlu0 %737
    %s740 = sor.u32 256, 16
    %741 = vbcast.lane.b32.xlu0 %v731, %s740
    %v742 = vpop.permute.xlu0 %741
    %s744 = sor.u32 256, 24
    %745 = vbcast.lane.b32.xlu0 %v731, %s744
    %v746 = vpop.permute.xlu0 %745
    %v747 = vmul.f32 %v32, %v715
    %v748 = vmul.f32 %v33, %v715
    %v749 = vmul.f32 %v34, %v719
    %v750 = vmul.f32 %v35, %v719
    %v751 = vmul.f32 %v36, %v723
    %v752 = vmul.f32 %v37, %v723
    %v753 = vmul.f32 %v38, %v727
    %v754 = vmul.f32 %v39, %v727
    %v755 = vmul.f32 %v40, %v734
    %v756 = vmul.f32 %v41, %v734
    %v757 = vmul.f32 %v42, %v738
    %v758 = vmul.f32 %v43, %v738
    %v759 = vmul.f32 %v44, %v742
    %v760 = vmul.f32 %v45, %v742
    %v761 = vmul.f32 %v46, %v746
    %v762 = vmul.f32 %v47, %v746
    %v763 = vlaneseq
    %v764 = vshrl.u32 %v763, 7
    %v765 = vsub.s32 0, %v764
    %v766 = vrot.slane %v585, %v765
    %768 = vbcast.lane.b32.xlu0 %v766, 256
    %v769 = vpop.permute.xlu0 %768
    %s771 = sor.u32 256, 8
    %772 = vbcast.lane.b32.xlu0 %v766, %s771
    %v773 = vpop.permute.xlu0 %772
    %s775 = sor.u32 256, 16
    %776 = vbcast.lane.b32.xlu0 %v766, %s775
    %v777 = vpop.permute.xlu0 %776
    %s779 = sor.u32 256, 24
    %780 = vbcast.lane.b32.xlu0 %v766, %s779
    %v781 = vpop.permute.xlu0 %780
    %v782 = vlaneseq
    %v783 = vshrl.u32 %v782, 7
    %v784 = vsub.s32 1, %v783
    %v785 = vrot.slane %v585, %v784
    %787 = vbcast.lane.b32.xlu0 %v785, 256
    %v788 = vpop.permute.xlu0 %787
    %s790 = sor.u32 256, 8
    %791 = vbcast.lane.b32.xlu0 %v785, %s790
    %v792 = vpop.permute.xlu0 %791
    %s794 = sor.u32 256, 16
    %795 = vbcast.lane.b32.xlu0 %v785, %s794
    %v796 = vpop.permute.xlu0 %795
    %s798 = sor.u32 256, 24
    %799 = vbcast.lane.b32.xlu0 %v785, %s798
    %v800 = vpop.permute.xlu0 %799
    %v801 = vadd.f32 %v747, %v769
    %v802 = vadd.f32 %v748, %v769
    %v803 = vadd.f32 %v749, %v773
    %v804 = vadd.f32 %v750, %v773
    %v805 = vadd.f32 %v751, %v777
    %v806 = vadd.f32 %v752, %v777
    %v807 = vadd.f32 %v753, %v781
    %v808 = vadd.f32 %v754, %v781
    %v809 = vadd.f32 %v755, %v788
    %v810 = vadd.f32 %v756, %v788
    %v811 = vadd.f32 %v757, %v792
    %v812 = vadd.f32 %v758, %v792
    %v813 = vadd.f32 %v759, %v796
    %v814 = vadd.f32 %v760, %v796
    %v815 = vadd.f32 %v761, %v800
    %v816 = vadd.f32 %v762, %v800
    %817 = vst [vmem:[#allocation5] sm:$0xff] %v801
    %818 = vst [vmem:[#allocation5 + $0x8] sm:$0xff] %v802
    %819 = vst [vmem:[#allocation5 + $0x10] sm:$0xff] %v803
    %820 = vst [vmem:[#allocation5 + $0x18] sm:$0xff] %v804
    %821 = vst [vmem:[#allocation5 + $0x20] sm:$0xff] %v805
    %822 = vst [vmem:[#allocation5 + $0x28] sm:$0xff] %v806
    %823 = vst [vmem:[#allocation5 + $0x30] sm:$0xff] %v807
    %824 = vst [vmem:[#allocation5 + $0x38] sm:$0xff] %v808
    %825 = vst [vmem:[#allocation5 + $0x40] sm:$0xff] %v809
    %826 = vst [vmem:[#allocation5 + $0x48] sm:$0xff] %v810
    %827 = vst [vmem:[#allocation5 + $0x50] sm:$0xff] %v811
    %828 = vst [vmem:[#allocation5 + $0x58] sm:$0xff] %v812
    %829 = vst [vmem:[#allocation5 + $0x60] sm:$0xff] %v813
    %830 = vst [vmem:[#allocation5 + $0x68] sm:$0xff] %v814
    %831 = vst [vmem:[#allocation5 + $0x70] sm:$0xff] %v815
    %832 = vst [vmem:[#allocation5 + $0x78] sm:$0xff] %v816
    // Predicated region
    $region22: #{tpu_custom_call.1} parent=1 // pred_check
      _
    $region23: #{tpu_custom_call.1} parent=1 // pred_check_branch
      %834 = sbr.rel (0) target = $region25
    $region24: #{tpu_custom_call.1} parent=1 // pred_region
      %s836 = ssub.s32 2048, 2048
      %837 = vsyncadd [#allocation4], %s836
      %s838 = sshll.u32 [#allocation5], 4
      %s839 = int_to_ptr.vmem [resolvable:$true] %s838
      %844 = dma.vmem_to_hbm [thread:$0]  %s839, 2048, %s4, [#allocation4], 256, 256, 16
    $region25: #{tpu_custom_call.1} parent=1 // pred_fallthru
      _
    // Predicated region
    $region26: #{tpu_custom_call.1} parent=1 // pred_check
      _
    $region27: #{tpu_custom_call.1} parent=1 // pred_check_branch
      %846 = sbr.rel (0) target = $region29
    $region28: #{tpu_custom_call.1} parent=1 // pred_region
      %847 = dma.done [#allocation4], 2048
    $region29: #{tpu_custom_call.1} parent=1 // pred_fallthru
      _
    %848 = vsyncpa [#allocation3], 1
    %849 = vsyncpa [#allocation4], 1

</llo_original>
